<compile_context>
chip_gen: v7x
topology: tpu7x:2x2x1
jax: 0.10.0
libtpu: 0.0.40
codegen_flags: <defaults>
</compile_context>

<pallas_src>
import functools
import math
from typing import NamedTuple, Optional

import jax
import jax.numpy as jnp
from jax.experimental import pallas as pl
from jax.experimental.pallas import tpu as pltpu


def _round_up(x, m):
    return ((x + m - 1) // m) * m


def _fused_mlp_kernel(*refs, num_hidden):
    if num_hidden > 0:
        x_ref, w0_ref, b0_ref, wh_ref, bh_ref, wl_ref, bl_ref, o_ref = refs
    else:
        x_ref, w0_ref, b0_ref, wl_ref, bl_ref, o_ref = refs
        wh_ref = bh_ref = None

    # Layer 0: K is padded only to 128; padded rows of x and w0 are zero, so
    # the contraction is exact.  bf16 operands, f32 MXU accumulation.
    h = jnp.dot(x_ref[...], w0_ref[...], preferred_element_type=jnp.float32)
    h = jnp.maximum(h + b0_ref[...], 0.0)

    # Hidden layers, statically unrolled; weights stay resident in VMEM.
    for l in range(num_hidden):
        h = jnp.dot(h.astype(wh_ref.dtype), wh_ref[l],
                    preferred_element_type=jnp.float32)
        h = jnp.maximum(h + bh_ref[l], 0.0)

    # Final layer (no ReLU): N padded only to 128 -> lane-dense unmasked store.
    y = jnp.dot(h.astype(wl_ref.dtype), wl_ref[...],
                preferred_element_type=jnp.float32)
    o_ref[...] = (y + bl_ref[...]).astype(o_ref.dtype)


class PreparedMLP(NamedTuple):
    w0: jax.Array            # (KPAD, H)  compute dtype, K zero-padded
    b0: jax.Array            # (1, H)     f32
    wh: Optional[jax.Array]  # (NH, H, H) compute dtype (None if depth == 2)
    bh: Optional[jax.Array]  # (NH, 1, H) f32           (None if depth == 2)
    wl: jax.Array            # (H, NPAD)  compute dtype, N zero-padded
    bl: jax.Array            # (1, NPAD)  f32, N zero-padded
    in_dim: int
    hidden_dim: int
    out_dim: int
    num_hidden: int
    kpad: int
    npad: int
    compute_dtype: object


def prepare_mlp_params(params, compute_dtype=jnp.bfloat16) -> PreparedMLP:
    """One-time weight prep (padding / stacking / bf16 cast), hoisted off the
    per-call path.  `params` is a list of (w, b) with w as (in, out)."""
    depth = len(params)
    assert depth >= 2
    in_dim = params[0][0].shape[0]
    H = params[0][0].shape[1]
    out_dim = params[-1][0].shape[1]
    num_hidden = depth - 2
    assert H % 128 == 0, "hidden_dim must be a multiple of 128"

    kpad = max(128, _round_up(in_dim, 128))
    npad = max(128, _round_up(out_dim, 128))

    w0 = (jnp.zeros((kpad, H), compute_dtype)
          .at[:in_dim, :].set(params[0][0].astype(compute_dtype)))
    b0 = params[0][1].reshape(1, H).astype(jnp.float32)

    if num_hidden > 0:
        wh = jnp.stack([params[i][0].astype(compute_dtype)
                        for i in range(1, depth - 1)])
        bh = jnp.stack([params[i][1].reshape(1, H).astype(jnp.float32)
                        for i in range(1, depth - 1)])
    else:
        wh = None
        bh = None

    wl = (jnp.zeros((H, npad), compute_dtype)
          .at[:, :out_dim].set(params[-1][0].astype(compute_dtype)))
    bl = (jnp.zeros((1, npad), jnp.float32)
          .at[:, :out_dim].set(params[-1][1].reshape(1, out_dim)
                               .astype(jnp.float32)))

    return PreparedMLP(w0, b0, wh, bh, wl, bl,
                       in_dim, H, out_dim, num_hidden, kpad, npad,
                       compute_dtype)


def _vmem_limit_bytes():
    # Raise the default scoped-VMEM cap (16/32 MiB) but stay under physical
    # capacity (64 MiB per core on v7x, 128 MiB on v5e/v6e).
    try:
        cap = int(pltpu.get_tpu_info().vmem_capacity_bytes)
    except Exception:
        cap = 64 * 1024 * 1024  # conservative v7x per-core fallback
    return min(100 * 1024 * 1024, int(cap * 7 // 8))


def fused_mlp(prepared: PreparedMLP, x: jax.Array) -> jax.Array:
    """Forward pass of the whole MLP in one fused Pallas kernel.

    x: (batch, in_dim) float32.  Returns (batch, out_dim) float32.
    """
    p = prepared
    m_real, k = x.shape
    assert k == p.in_dim

    # Batch tile: multiple of 8 (sublanes), capped at 512 (multiple of the
    # 256-tall v6e/v7x MXU when the batch is large enough).
    tm = min(max(8, _round_up(m_real, 8)), 512)
    m_pad = _round_up(m_real, tm)
    grid_m = m_pad // tm

    x_pad = (jnp.zeros((m_pad, p.kpad), p.compute_dtype)
             .at[:m_real, :k].set(x.astype(p.compute_dtype)))

    H, KPAD, NPAD, NH = p.hidden_dim, p.kpad, p.npad, p.num_hidden

    in_specs = [
        pl.BlockSpec((tm, KPAD), lambda i: (i, 0)),       # x tile (batch-tiled)
        pl.BlockSpec((KPAD, H), lambda i: (0, 0)),        # w0   (VMEM-resident)
        pl.BlockSpec((1, H), lambda i: (0, 0)),           # b0
    ]
    args = [x_pad, p.w0, p.b0]
    if NH > 0:
        in_specs += [
            pl.BlockSpec((NH, H, H), lambda i: (0, 0, 0)),  # stacked hidden W
            pl.BlockSpec((NH, 1, H), lambda i: (0, 0, 0)),  # stacked hidden b
        ]
        args += [p.wh, p.bh]
    in_specs += [
        pl.BlockSpec((H, NPAD), lambda i: (0, 0)),        # w_last (padded N)
        pl.BlockSpec((1, NPAD), lambda i: (0, 0)),        # b_last (padded N)
    ]
    args += [p.wl, p.bl]

    kernel = functools.partial(_fused_mlp_kernel, num_hidden=NH)

    out_pad = pl.pallas_call(
        kernel,
        out_shape=jax.ShapeDtypeStruct((m_pad, NPAD), jnp.float32),
        grid_spec=pltpu.PrefetchScalarGridSpec(
            num_scalar_prefetch=0,
            grid=(grid_m,),
            in_specs=in_specs,
            out_specs=pl.BlockSpec((tm, NPAD), lambda i: (i, 0)),
        ),
        compiler_params=pltpu.CompilerParams(
            dimension_semantics=("parallel",),
            vmem_limit_bytes=_vmem_limit_bytes(),
        ),
    )(*args)

    # Slice back to the real batch / out_dim (padding was exact / zero).
    return out_pad[:m_real, :p.out_dim]


def init_mlp_params(key, in_dim=2, hidden_dim=128, out_dim=2, depth=8):
    """Deterministic init matching nn.Linear's uniform(-1/sqrt(fan_in), ...)."""
    dims = [in_dim] + [hidden_dim] * (depth - 1) + [out_dim]
    params = []
    for i in range(depth):
        fan_in, fan_out = dims[i], dims[i + 1]
        key, kw, kb = jax.random.split(key, 3)
        bound = 1.0 / math.sqrt(fan_in)
        # stored as (in, out) == PyTorch weight.T
        w = jax.random.uniform(kw, (fan_in, fan_out), jnp.float32, -bound, bound)
        b = jax.random.uniform(kb, (fan_out,), jnp.float32, -bound, bound)
        params.append((w, b))
    return params


if __name__ == "__main__":
    key = jax.random.PRNGKey(0)
    # Small shapes consistent with the module (module default hidden=1024 also
    # works; kernel structure is identical).
    in_dim, hidden_dim, out_dim, depth = 2, 128, 2, 8
    batch = 8

    kp, kx = jax.random.split(key)
    params = init_mlp_params(kp, in_dim, hidden_dim, out_dim, depth)
    x = jax.random.normal(kx, (batch, in_dim), jnp.float32)

    prepared = prepare_mlp_params(params)          # one-time, hoisted weight prep
    out = jax.block_until_ready(fused_mlp(prepared, x))
    assert out.shape == (batch, out_dim)

    # Reference 1: identical bf16-weight / f32-accumulate math in plain JAX.
    def ref_bf16(ps, xin):
        h = xin
        for i, (w, b) in enumerate(ps):
            h = jnp.dot(h.astype(jnp.bfloat16), w.astype(jnp.bfloat16),
                        preferred_element_type=jnp.float32) + b
            if i < len(ps) - 1:
                h = jnp.maximum(h, 0.0)
        return h

    # Reference 2: full-f32 math (the PyTorch module's exact semantics).
    def ref_f32(ps, xin):
        h = xin
        for i, (w, b) in enumerate(ps):
            h = h @ w + b
            if i < len(ps) - 1:
                h = jnp.maximum(h, 0.0)
        return h

    r_bf = ref_bf16(params, x)
    r_f32 = ref_f32(params, x)
    assert jnp.allclose(out, r_bf, atol=2e-3, rtol=2e-3), \
        f"bf16-ref max abs err = {jnp.max(jnp.abs(out - r_bf))}"
    assert jnp.allclose(out, r_f32, atol=5e-2, rtol=5e-2), \
        f"f32-ref max abs err = {jnp.max(jnp.abs(out - r_f32))}"

    # Also exercise the depth==2 path (no stacked hidden-weight inputs at all).
    params2 = init_mlp_params(kp, in_dim, hidden_dim, out_dim, depth=2)
    out2 = jax.block_until_ready(fused_mlp(prepare_mlp_params(params2), x))
    r2 = ref_bf16(params2, x)
    assert jnp.allclose(out2, r2, atol=2e-3, rtol=2e-3), \
        f"depth=2 max abs err = {jnp.max(jnp.abs(out2 - r2))}"

    print("KERNEL_OK")
</pallas_src>

<mosaic_0001>
module attributes {stable_mosaic.version = 11 : i64} {
  func.func @_fused_mlp_kernel(%arg0: i32, %arg1: memref<8x128xbf16, #tpu.memory_space<vmem>>, %arg2: memref<128x128xbf16, #tpu.memory_space<vmem>>, %arg3: memref<1x128xf32, #tpu.memory_space<vmem>>, %arg4: memref<6x128x128xbf16, #tpu.memory_space<vmem>>, %arg5: memref<6x1x128xf32, #tpu.memory_space<vmem>>, %arg6: memref<128x128xbf16, #tpu.memory_space<vmem>>, %arg7: memref<1x128xf32, #tpu.memory_space<vmem>>, %arg8: memref<8x128xf32, #tpu.memory_space<vmem>>) attributes {dimension_semantics = [#tpu.dimension_semantics<parallel>], iteration_bounds = array<i64: 1>, scalar_prefetch = 0 : i64, scratch_operands = 0 : i64, tpu.core_type = #tpu.core_type<tc>, window_params = [{transform_indices = @transform_0, window_bounds = array<i64: 8, 128>}, {pipeline_mode = #tpu.pipeline_mode<synchronous>, transform_indices = @transform_1, window_bounds = array<i64: 128, 128>}, {pipeline_mode = #tpu.pipeline_mode<synchronous>, transform_indices = @transform_2, window_bounds = array<i64: 1, 128>}, {pipeline_mode = #tpu.pipeline_mode<synchronous>, transform_indices = @transform_3, window_bounds = array<i64: 6, 128, 128>}, {pipeline_mode = #tpu.pipeline_mode<synchronous>, transform_indices = @transform_4, window_bounds = array<i64: 6, 1, 128>}, {pipeline_mode = #tpu.pipeline_mode<synchronous>, transform_indices = @transform_5, window_bounds = array<i64: 128, 128>}, {pipeline_mode = #tpu.pipeline_mode<synchronous>, transform_indices = @transform_6, window_bounds = array<i64: 1, 128>}, {transform_indices = @transform_7, window_bounds = array<i64: 8, 128>}]} {
    %c0 = arith.constant 0 : index
    %c0_0 = arith.constant 0 : index
    %0 = vector.load %arg1[%c0, %c0_0] : memref<8x128xbf16, #tpu.memory_space<vmem>>, vector<8x128xbf16>
    %c0_1 = arith.constant 0 : index
    %c0_2 = arith.constant 0 : index
    %1 = vector.load %arg2[%c0_1, %c0_2] : memref<128x128xbf16, #tpu.memory_space<vmem>>, vector<128x128xbf16>
    %cst = arith.constant dense<0.000000e+00> : vector<8x128xf32>
    %2 = tpu.matmul %0, %1, %cst {dimension_numbers = #tpu.dot_dimension_numbers<[1], [0], [0], [1], [0, 0, 1, 1], [], []>} : vector<8x128xbf16>, vector<128x128xbf16>, vector<8x128xf32> -> vector<8x128xf32>
    %c0_3 = arith.constant 0 : index
    %c0_4 = arith.constant 0 : index
    %3 = vector.load %arg3[%c0_3, %c0_4] : memref<1x128xf32, #tpu.memory_space<vmem>>, vector<1x128xf32>
    %4 = vector.broadcast %3 : vector<1x128xf32> to vector<8x128xf32>
    %5 = arith.addf %2, %4 : vector<8x128xf32>
    %cst_5 = arith.constant 0.000000e+00 : f32
    %6 = vector.broadcast %cst_5 : f32 to vector<8x128xf32>
    %7 = arith.maximumf %5, %6 : vector<8x128xf32>
    %8 = arith.truncf %7 : vector<8x128xf32> to vector<8x128xbf16>
    %c0_6 = arith.constant 0 : index
    %c0_7 = arith.constant 0 : index
    %c0_8 = arith.constant 0 : index
    %9 = vector.load %arg4[%c0_6, %c0_7, %c0_8] : memref<6x128x128xbf16, #tpu.memory_space<vmem>>, vector<1x128x128xbf16>
    %10 = vector.shape_cast %9 : vector<1x128x128xbf16> to vector<128x128xbf16>
    %cst_9 = arith.constant dense<0.000000e+00> : vector<8x128xf32>
    %11 = tpu.matmul %8, %10, %cst_9 {dimension_numbers = #tpu.dot_dimension_numbers<[1], [0], [0], [1], [0, 0, 1, 1], [], []>} : vector<8x128xbf16>, vector<128x128xbf16>, vector<8x128xf32> -> vector<8x128xf32>
    %c0_10 = arith.constant 0 : index
    %c0_11 = arith.constant 0 : index
    %c0_12 = arith.constant 0 : index
    %12 = vector.load %arg5[%c0_10, %c0_11, %c0_12] : memref<6x1x128xf32, #tpu.memory_space<vmem>>, vector<1x1x128xf32>
    %13 = vector.shape_cast %12 : vector<1x1x128xf32> to vector<1x128xf32>
    %14 = vector.broadcast %13 : vector<1x128xf32> to vector<8x128xf32>
    %15 = arith.addf %11, %14 : vector<8x128xf32>
    %cst_13 = arith.constant 0.000000e+00 : f32
    %16 = vector.broadcast %cst_13 : f32 to vector<8x128xf32>
    %17 = arith.maximumf %15, %16 : vector<8x128xf32>
    %18 = arith.truncf %17 : vector<8x128xf32> to vector<8x128xbf16>
    %c1 = arith.constant 1 : index
    %c0_14 = arith.constant 0 : index
    %c0_15 = arith.constant 0 : index
    %19 = vector.load %arg4[%c1, %c0_14, %c0_15] : memref<6x128x128xbf16, #tpu.memory_space<vmem>>, vector<1x128x128xbf16>
    %20 = vector.shape_cast %19 : vector<1x128x128xbf16> to vector<128x128xbf16>
    %cst_16 = arith.constant dense<0.000000e+00> : vector<8x128xf32>
    %21 = tpu.matmul %18, %20, %cst_16 {dimension_numbers = #tpu.dot_dimension_numbers<[1], [0], [0], [1], [0, 0, 1, 1], [], []>} : vector<8x128xbf16>, vector<128x128xbf16>, vector<8x128xf32> -> vector<8x128xf32>
    %c1_17 = arith.constant 1 : index
    %c0_18 = arith.constant 0 : index
    %c0_19 = arith.constant 0 : index
    %22 = vector.load %arg5[%c1_17, %c0_18, %c0_19] : memref<6x1x128xf32, #tpu.memory_space<vmem>>, vector<1x1x128xf32>
    %23 = vector.shape_cast %22 : vector<1x1x128xf32> to vector<1x128xf32>
    %24 = vector.broadcast %23 : vector<1x128xf32> to vector<8x128xf32>
    %25 = arith.addf %21, %24 : vector<8x128xf32>
    %cst_20 = arith.constant 0.000000e+00 : f32
    %26 = vector.broadcast %cst_20 : f32 to vector<8x128xf32>
    %27 = arith.maximumf %25, %26 : vector<8x128xf32>
    %28 = arith.truncf %27 : vector<8x128xf32> to vector<8x128xbf16>
    %c2 = arith.constant 2 : index
    %c0_21 = arith.constant 0 : index
    %c0_22 = arith.constant 0 : index
    %29 = vector.load %arg4[%c2, %c0_21, %c0_22] : memref<6x128x128xbf16, #tpu.memory_space<vmem>>, vector<1x128x128xbf16>
    %30 = vector.shape_cast %29 : vector<1x128x128xbf16> to vector<128x128xbf16>
    %cst_23 = arith.constant dense<0.000000e+00> : vector<8x128xf32>
    %31 = tpu.matmul %28, %30, %cst_23 {dimension_numbers = #tpu.dot_dimension_numbers<[1], [0], [0], [1], [0, 0, 1, 1], [], []>} : vector<8x128xbf16>, vector<128x128xbf16>, vector<8x128xf32> -> vector<8x128xf32>
    %c2_24 = arith.constant 2 : index
    %c0_25 = arith.constant 0 : index
    %c0_26 = arith.constant 0 : index
    %32 = vector.load %arg5[%c2_24, %c0_25, %c0_26] : memref<6x1x128xf32, #tpu.memory_space<vmem>>, vector<1x1x128xf32>
    %33 = vector.shape_cast %32 : vector<1x1x128xf32> to vector<1x128xf32>
    %34 = vector.broadcast %33 : vector<1x128xf32> to vector<8x128xf32>
    %35 = arith.addf %31, %34 : vector<8x128xf32>
    %cst_27 = arith.constant 0.000000e+00 : f32
    %36 = vector.broadcast %cst_27 : f32 to vector<8x128xf32>
    %37 = arith.maximumf %35, %36 : vector<8x128xf32>
    %38 = arith.truncf %37 : vector<8x128xf32> to vector<8x128xbf16>
    %c3 = arith.constant 3 : index
    %c0_28 = arith.constant 0 : index
    %c0_29 = arith.constant 0 : index
    %39 = vector.load %arg4[%c3, %c0_28, %c0_29] : memref<6x128x128xbf16, #tpu.memory_space<vmem>>, vector<1x128x128xbf16>
    %40 = vector.shape_cast %39 : vector<1x128x128xbf16> to vector<128x128xbf16>
    %cst_30 = arith.constant dense<0.000000e+00> : vector<8x128xf32>
    %41 = tpu.matmul %38, %40, %cst_30 {dimension_numbers = #tpu.dot_dimension_numbers<[1], [0], [0], [1], [0, 0, 1, 1], [], []>} : vector<8x128xbf16>, vector<128x128xbf16>, vector<8x128xf32> -> vector<8x128xf32>
    %c3_31 = arith.constant 3 : index
    %c0_32 = arith.constant 0 : index
    %c0_33 = arith.constant 0 : index
    %42 = vector.load %arg5[%c3_31, %c0_32, %c0_33] : memref<6x1x128xf32, #tpu.memory_space<vmem>>, vector<1x1x128xf32>
    %43 = vector.shape_cast %42 : vector<1x1x128xf32> to vector<1x128xf32>
    %44 = vector.broadcast %43 : vector<1x128xf32> to vector<8x128xf32>
    %45 = arith.addf %41, %44 : vector<8x128xf32>
    %cst_34 = arith.constant 0.000000e+00 : f32
    %46 = vector.broadcast %cst_34 : f32 to vector<8x128xf32>
    %47 = arith.maximumf %45, %46 : vector<8x128xf32>
    %48 = arith.truncf %47 : vector<8x128xf32> to vector<8x128xbf16>
    %c4 = arith.constant 4 : index
    %c0_35 = arith.constant 0 : index
    %c0_36 = arith.constant 0 : index
    %49 = vector.load %arg4[%c4, %c0_35, %c0_36] : memref<6x128x128xbf16, #tpu.memory_space<vmem>>, vector<1x128x128xbf16>
    %50 = vector.shape_cast %49 : vector<1x128x128xbf16> to vector<128x128xbf16>
    %cst_37 = arith.constant dense<0.000000e+00> : vector<8x128xf32>
    %51 = tpu.matmul %48, %50, %cst_37 {dimension_numbers = #tpu.dot_dimension_numbers<[1], [0], [0], [1], [0, 0, 1, 1], [], []>} : vector<8x128xbf16>, vector<128x128xbf16>, vector<8x128xf32> -> vector<8x128xf32>
    %c4_38 = arith.constant 4 : index
    %c0_39 = arith.constant 0 : index
    %c0_40 = arith.constant 0 : index
    %52 = vector.load %arg5[%c4_38, %c0_39, %c0_40] : memref<6x1x128xf32, #tpu.memory_space<vmem>>, vector<1x1x128xf32>
    %53 = vector.shape_cast %52 : vector<1x1x128xf32> to vector<1x128xf32>
    %54 = vector.broadcast %53 : vector<1x128xf32> to vector<8x128xf32>
    %55 = arith.addf %51, %54 : vector<8x128xf32>
    %cst_41 = arith.constant 0.000000e+00 : f32
    %56 = vector.broadcast %cst_41 : f32 to vector<8x128xf32>
    %57 = arith.maximumf %55, %56 : vector<8x128xf32>
    %58 = arith.truncf %57 : vector<8x128xf32> to vector<8x128xbf16>
    %c5 = arith.constant 5 : index
    %c0_42 = arith.constant 0 : index
    %c0_43 = arith.constant 0 : index
    %59 = vector.load %arg4[%c5, %c0_42, %c0_43] : memref<6x128x128xbf16, #tpu.memory_space<vmem>>, vector<1x128x128xbf16>
    %60 = vector.shape_cast %59 : vector<1x128x128xbf16> to vector<128x128xbf16>
    %cst_44 = arith.constant dense<0.000000e+00> : vector<8x128xf32>
    %61 = tpu.matmul %58, %60, %cst_44 {dimension_numbers = #tpu.dot_dimension_numbers<[1], [0], [0], [1], [0, 0, 1, 1], [], []>} : vector<8x128xbf16>, vector<128x128xbf16>, vector<8x128xf32> -> vector<8x128xf32>
    %c5_45 = arith.constant 5 : index
    %c0_46 = arith.constant 0 : index
    %c0_47 = arith.constant 0 : index
    %62 = vector.load %arg5[%c5_45, %c0_46, %c0_47] : memref<6x1x128xf32, #tpu.memory_space<vmem>>, vector<1x1x128xf32>
    %63 = vector.shape_cast %62 : vector<1x1x128xf32> to vector<1x128xf32>
    %64 = vector.broadcast %63 : vector<1x128xf32> to vector<8x128xf32>
    %65 = arith.addf %61, %64 : vector<8x128xf32>
    %cst_48 = arith.constant 0.000000e+00 : f32
    %66 = vector.broadcast %cst_48 : f32 to vector<8x128xf32>
    %67 = arith.maximumf %65, %66 : vector<8x128xf32>
    %68 = arith.truncf %67 : vector<8x128xf32> to vector<8x128xbf16>
    %c0_49 = arith.constant 0 : index
    %c0_50 = arith.constant 0 : index
    %69 = vector.load %arg6[%c0_49, %c0_50] : memref<128x128xbf16, #tpu.memory_space<vmem>>, vector<128x128xbf16>
    %cst_51 = arith.constant dense<0.000000e+00> : vector<8x128xf32>
    %70 = tpu.matmul %68, %69, %cst_51 {dimension_numbers = #tpu.dot_dimension_numbers<[1], [0], [0], [1], [0, 0, 1, 1], [], []>} : vector<8x128xbf16>, vector<128x128xbf16>, vector<8x128xf32> -> vector<8x128xf32>
    %c0_52 = arith.constant 0 : index
    %c0_53 = arith.constant 0 : index
    %71 = vector.load %arg7[%c0_52, %c0_53] : memref<1x128xf32, #tpu.memory_space<vmem>>, vector<1x128xf32>
    %72 = vector.broadcast %71 : vector<1x128xf32> to vector<8x128xf32>
    %73 = arith.addf %70, %72 : vector<8x128xf32>
    %c0_54 = arith.constant 0 : index
    %c0_55 = arith.constant 0 : index
    %74 = vector.load %arg8[%c0_54, %c0_55] : memref<8x128xf32, #tpu.memory_space<vmem>>, vector<8x128xf32>
    tpu.vector_store %arg8[%c0_54, %c0_55], %73 {strides = array<i32>} : memref<8x128xf32, #tpu.memory_space<vmem>>, vector<8x128xf32>,
    return
  }
  func.func @transform_0(%arg0: i32) -> (i32, i32) {
    %c0_i32 = arith.constant 0 : i32
    %c0_i32_0 = arith.constant 0 : i32
    return %arg0, %c0_i32 : i32, i32
  }
  func.func @transform_1(%arg0: i32) -> (i32, i32) {
    %c0_i32 = arith.constant 0 : i32
    %c0_i32_0 = arith.constant 0 : i32
    %c0_i32_1 = arith.constant 0 : i32
    return %c0_i32, %c0_i32_0 : i32, i32
  }
  func.func @transform_2(%arg0: i32) -> (i32, i32) {
    %c0_i32 = arith.constant 0 : i32
    %c0_i32_0 = arith.constant 0 : i32
    %c0_i32_1 = arith.constant 0 : i32
    return %c0_i32, %c0_i32_0 : i32, i32
  }
  func.func @transform_3(%arg0: i32) -> (i32, i32, i32) {
    %c0_i32 = arith.constant 0 : i32
    %c0_i32_0 = arith.constant 0 : i32
    %c0_i32_1 = arith.constant 0 : i32
    %c0_i32_2 = arith.constant 0 : i32
    return %c0_i32, %c0_i32_0, %c0_i32_1 : i32, i32, i32
  }
  func.func @transform_4(%arg0: i32) -> (i32, i32, i32) {
    %c0_i32 = arith.constant 0 : i32
    %c0_i32_0 = arith.constant 0 : i32
    %c0_i32_1 = arith.constant 0 : i32
    %c0_i32_2 = arith.constant 0 : i32
    return %c0_i32, %c0_i32_0, %c0_i32_1 : i32, i32, i32
  }
  func.func @transform_5(%arg0: i32) -> (i32, i32) {
    %c0_i32 = arith.constant 0 : i32
    %c0_i32_0 = arith.constant 0 : i32
    %c0_i32_1 = arith.constant 0 : i32
    return %c0_i32, %c0_i32_0 : i32, i32
  }
  func.func @transform_6(%arg0: i32) -> (i32, i32) {
    %c0_i32 = arith.constant 0 : i32
    %c0_i32_0 = arith.constant 0 : i32
    %c0_i32_1 = arith.constant 0 : i32
    return %c0_i32, %c0_i32_0 : i32, i32
  }
  func.func @transform_7(%arg0: i32) -> (i32, i32) {
    %c0_i32 = arith.constant 0 : i32
    %c0_i32_0 = arith.constant 0 : i32
    return %arg0, %c0_i32 : i32, i32
  }
}

</mosaic_0001>

<llo_original>
// kernel: tpu_custom_call.1
$region0: #{tpu_custom_call.1}
  #allocation0 [shape = 'u32[]', space=smem, size = 0x4, offset = 0x4, fixed_abs, tag = 'smem constant byte address 0x4 - core index']
  #allocation1 [shape = 'u32[144,128]{1,0:T(1,128)}', space=vmem, size = 0x12000, scoped, tag = 'internal scratch']
  %s0 = inlined_call_operand.hbm [shape: bf16[8,128], index: 0, kind: input, shape index: {}]
  %s1 = inlined_call_operand.hbm [shape: bf16[128,128], index: 1, kind: input, shape index: {}]
  %s2 = inlined_call_operand.vmem [shape: f32[1,128], index: 2, kind: input, shape index: {}]
  %s3 = inlined_call_operand.hbm [shape: bf16[6,128,128], index: 3, kind: input, shape index: {}]
  %s4 = inlined_call_operand.vmem [shape: f32[6,1,128], index: 4, kind: input, shape index: {}]
  %s5 = inlined_call_operand.hbm [shape: bf16[128,128], index: 5, kind: input, shape index: {}]
  %s6 = inlined_call_operand.vmem [shape: f32[1,128], index: 6, kind: input, shape index: {}]
  %s7 = inlined_call_operand.hbm [shape: f32[8,128], index: 7, kind: output, shape index: {}]
  %s8 = sld [smem:[#allocation0]]
  $region54: #{tpu_custom_call.1} parent=0
    _
  %s10 = ssub.s32 1, %s8
  %s11 = scalar_select 0, %s10, %s8
  $region1: #{tpu_custom_call.1} parent=0
    #allocation2 [shape = 'u8[2048]{0}', space=vmem, size = 0x800, scoped, tag = 'input window, operand 0, single buffered']
    #allocation3 [shape = 's32[1]{0}', space=sflag, size = 0x4, scoped, tag = 'scoped memory for tpu_custom_call.1']
    #allocation4 [shape = 's32[1]{0}', space=sflag, size = 0x4, scoped, tag = 'scoped memory for tpu_custom_call.1']
    #allocation5 [shape = 'u8[32768]{0}', space=vmem, size = 0x8000, scoped, tag = 'input window, operand 1, single buffered']
    #allocation6 [shape = 's32[1]{0}', space=sflag, size = 0x4, scoped, tag = 'scoped memory for tpu_custom_call.1']
    #allocation7 [shape = 'u8[196608]{0}', space=vmem, size = 0x30000, scoped, tag = 'input window, operand 3, single buffered']
    #allocation8 [shape = 'u8[32768]{0}', space=vmem, size = 0x8000, scoped, tag = 'input window, operand 5, single buffered']
    #allocation9 [shape = 's32[1]{0}', space=sflag, size = 0x4, scoped, tag = 'scoped memory for tpu_custom_call.1']
    #allocation10 [shape = 'u8[4096]{0}', space=vmem, size = 0x1000, scoped, tag = 'output window, operand 0, single buffered']
    %12 = vsyncpa [#allocation3], 0
    %13 = vsyncpa [#allocation6], 0
    %14 = vsyncpa [#allocation9], 0
    %15 = vsyncpa [#allocation4], 0
    // Predicated region
    $region2: #{tpu_custom_call.1} parent=1 // pred_check
      _
    $region3: #{tpu_custom_call.1} parent=1 // pred_check_branch
      %17 = sbr.rel (0) target = $region5
    $region4: #{tpu_custom_call.1} parent=1 // pred_region
      %s19 = ssub.s32 64, 64
      %20 = vsyncadd [#allocation3], %s19
      %s22 = sshll.u32 [#allocation2], 4
      %s23 = int_to_ptr.vmem [resolvable:$true] %s22
      %25 = dma.hbm_to_vmem [thread:$0]  %s0, 64, %s23, [#allocation3]
    $region5: #{tpu_custom_call.1} parent=1 // pred_fallthru
      _
    // Predicated region
    $region6: #{tpu_custom_call.1} parent=1 // pred_check
      _
    $region7: #{tpu_custom_call.1} parent=1 // pred_check_branch
      %27 = sbr.rel (0) target = $region9
    $region8: #{tpu_custom_call.1} parent=1 // pred_region
      %s29 = ssub.s32 1024, 1024
      %30 = vsyncadd [#allocation6], %s29
      %s31 = sshll.u32 [#allocation5], 4
      %s32 = int_to_ptr.vmem [resolvable:$true] %s31
      %37 = dma.hbm_to_vmem [thread:$0]  %s1, 1024, %s32, [#allocation6], 64, 64, 4
    $region9: #{tpu_custom_call.1} parent=1 // pred_fallthru
      _
    // Predicated region
    $region10: #{tpu_custom_call.1} parent=1 // pred_check
      _
    $region11: #{tpu_custom_call.1} parent=1 // pred_check_branch
      %39 = sbr.rel (0) target = $region13
    $region12: #{tpu_custom_call.1} parent=1 // pred_region
      _
    $region13: #{tpu_custom_call.1} parent=1 // pred_fallthru
      _
    // Predicated region
    $region14: #{tpu_custom_call.1} parent=1 // pred_check
      _
    $region15: #{tpu_custom_call.1} parent=1 // pred_check_branch
      %41 = sbr.rel (0) target = $region17
    $region16: #{tpu_custom_call.1} parent=1 // pred_region
      %s43 = ssub.s32 6144, 6144
      %44 = vsyncadd [#allocation6], %s43
      %s45 = sshll.u32 [#allocation7], 4
      %s46 = int_to_ptr.vmem [resolvable:$true] %s45
      %51 = dma.hbm_to_vmem [thread:$0]  %s3, 6144, %s46, [#allocation6], 64, 64, 4
    $region17: #{tpu_custom_call.1} parent=1 // pred_fallthru
      _
    // Predicated region
    $region18: #{tpu_custom_call.1} parent=1 // pred_check
      _
    $region19: #{tpu_custom_call.1} parent=1 // pred_check_branch
      %53 = sbr.rel (0) target = $region21
    $region20: #{tpu_custom_call.1} parent=1 // pred_region
      _
    $region21: #{tpu_custom_call.1} parent=1 // pred_fallthru
      _
    // Predicated region
    $region22: #{tpu_custom_call.1} parent=1 // pred_check
      _
    $region23: #{tpu_custom_call.1} parent=1 // pred_check_branch
      %55 = sbr.rel (0) target = $region25
    $region24: #{tpu_custom_call.1} parent=1 // pred_region
      %s57 = ssub.s32 1024, 1024
      %58 = vsyncadd [#allocation9], %s57
      %s59 = sshll.u32 [#allocation8], 4
      %s60 = int_to_ptr.vmem [resolvable:$true] %s59
      %65 = dma.hbm_to_vmem [thread:$0]  %s5, 1024, %s60, [#allocation9], 64, 64, 4
    $region25: #{tpu_custom_call.1} parent=1 // pred_fallthru
      _
    // Predicated region
    $region26: #{tpu_custom_call.1} parent=1 // pred_check
      _
    $region27: #{tpu_custom_call.1} parent=1 // pred_check_branch
      %67 = sbr.rel (0) target = $region29
    $region28: #{tpu_custom_call.1} parent=1 // pred_region
      _
    $region29: #{tpu_custom_call.1} parent=1 // pred_fallthru
      _
    // Predicated region
    $region30: #{tpu_custom_call.1} parent=1 // pred_check
      _
    $region31: #{tpu_custom_call.1} parent=1 // pred_check_branch
      %69 = sbr.rel (0) target = $region33
    $region32: #{tpu_custom_call.1} parent=1 // pred_region
      %70 = dma.done [#allocation3], 64
    $region33: #{tpu_custom_call.1} parent=1 // pred_fallthru
      _
    // Predicated region
    $region34: #{tpu_custom_call.1} parent=1 // pred_check
      _
    $region35: #{tpu_custom_call.1} parent=1 // pred_check_branch
      %72 = sbr.rel (0) target = $region37
    $region36: #{tpu_custom_call.1} parent=1 // pred_region
      %73 = dma.done [#allocation6], 1024
    $region37: #{tpu_custom_call.1} parent=1 // pred_fallthru
      _
    // Predicated region
    $region38: #{tpu_custom_call.1} parent=1 // pred_check
      _
    $region39: #{tpu_custom_call.1} parent=1 // pred_check_branch
      %75 = sbr.rel (0) target = $region41
    $region40: #{tpu_custom_call.1} parent=1 // pred_region
      %76 = dma.done [#allocation6], 6144
    $region41: #{tpu_custom_call.1} parent=1 // pred_fallthru
      _
    // Predicated region
    $region42: #{tpu_custom_call.1} parent=1 // pred_check
      _
    $region43: #{tpu_custom_call.1} parent=1 // pred_check_branch
      %78 = sbr.rel (0) target = $region45
    $region44: #{tpu_custom_call.1} parent=1 // pred_region
      %79 = dma.done [#allocation9], 1024
    $region45: #{tpu_custom_call.1} parent=1 // pred_fallthru
      _
    %v81 = vld [vmem:[#allocation2] sm:$0xf]
    %v82 = vld [vmem:[#allocation5] sm:$0xf]
    %v83 = vld [vmem:[#allocation5 + $0x4] sm:$0xf]
    %v84 = vld [vmem:[#allocation5 + $0x8] sm:$0xf]
    %v85 = vld [vmem:[#allocation5 + $0xc] sm:$0xf]
    %v86 = vld [vmem:[#allocation5 + $0x10] sm:$0xf]
    %v87 = vld [vmem:[#allocation5 + $0x14] sm:$0xf]
    %v88 = vld [vmem:[#allocation5 + $0x18] sm:$0xf]
    %v89 = vld [vmem:[#allocation5 + $0x1c] sm:$0xf]
    %v90 = vld [vmem:[#allocation5 + $0x20] sm:$0xf]
    %v91 = vld [vmem:[#allocation5 + $0x24] sm:$0xf]
    %v92 = vld [vmem:[#allocation5 + $0x28] sm:$0xf]
    %v93 = vld [vmem:[#allocation5 + $0x2c] sm:$0xf]
    %v94 = vld [vmem:[#allocation5 + $0x30] sm:$0xf]
    %v95 = vld [vmem:[#allocation5 + $0x34] sm:$0xf]
    %v96 = vld [vmem:[#allocation5 + $0x38] sm:$0xf]
    %v97 = vld [vmem:[#allocation5 + $0x3c] sm:$0xf]
    %v98 = vld [vmem:[%s2] sm:$0x1]
    %v100 = vlaneseq
    %v101 = vshrl.u32 %v100, 7
    %v102 = vsub.s32 0, %v101
    %v103 = vrot.slane %v98, %v102
    %v121 = vunpack.c.l.b16 %v82
    %v122 = vunpack.c.l.b16 %v83
    %v123 = vunpack.c.l.b16 %v84
    %v124 = vunpack.c.l.b16 %v85
    %v125 = vunpack.c.l.b16 %v86
    %v126 = vunpack.c.l.b16 %v87
    %v127 = vunpack.c.l.b16 %v88
    %v128 = vunpack.c.l.b16 %v89
    %v129 = vunpack.c.l.b16 %v90
    %v130 = vunpack.c.l.b16 %v91
    %v131 = vunpack.c.l.b16 %v92
    %v132 = vunpack.c.l.b16 %v93
    %v133 = vunpack.c.l.b16 %v94
    %v134 = vunpack.c.l.b16 %v95
    %v135 = vunpack.c.l.b16 %v96
    %v136 = vunpack.c.l.b16 %v97
    %v137 = vpack.c.b16 %v122, %v121
    %v138 = vpack.c.b16 %v124, %v123
    %v139 = vpack.c.b16 %v126, %v125
    %v140 = vpack.c.b16 %v128, %v127
    %v141 = vpack.c.b16 %v130, %v129
    %v142 = vpack.c.b16 %v132, %v131
    %v143 = vpack.c.b16 %v134, %v133
    %v144 = vpack.c.b16 %v136, %v135
    %153 = vmatprep.subr.bf16.mxu0 0
    %154 = vmatpush1.bf16.msra.mxu0 %v137
    %155 = vmatprep.subr.bf16.mxu0 0
    %156 = vmatpush1.bf16.msra.mxu0 %v138
    %157 = vmatprep.subr.bf16.mxu0 0
    %158 = vmatpush1.bf16.msra.mxu0 %v139
    %159 = vmatprep.subr.bf16.mxu0 0
    %160 = vmatpush1.bf16.msra.mxu0 %v140
    %161 = vmatprep.subr.bf16.mxu0 0
    %162 = vmatpush1.bf16.msra.mxu0 %v141
    %163 = vmatprep.subr.bf16.mxu0 0
    %164 = vmatpush1.bf16.msra.mxu0 %v142
    %165 = vmatprep.subr.bf16.mxu0 0
    %166 = vmatpush1.bf16.msra.mxu0 %v143
    %167 = vmatprep.subr.bf16.mxu0 0
    %168 = vmatpush1.bf16.msra.mxu0 %v144
    %169 = vmatprep.subr.bf16.mxu0 0
    %170 = vmatpush1.bf16.msra.mxu0 0
    %171 = vmatprep.subr.bf16.mxu0 0
    %172 = vmatpush1.bf16.msra.mxu0 0
    %173 = vmatprep.subr.bf16.mxu0 0
    %174 = vmatpush1.bf16.msra.mxu0 0
    %175 = vmatprep.subr.bf16.mxu0 0
    %176 = vmatpush1.bf16.msra.mxu0 0
    %177 = vmatprep.subr.bf16.mxu0 0
    %178 = vmatpush1.bf16.msra.mxu0 0
    %179 = vmatprep.subr.bf16.mxu0 0
    %180 = vmatpush1.bf16.msra.mxu0 0
    %181 = vmatprep.subr.bf16.mxu0 0
    %182 = vmatpush1.bf16.msra.mxu0 0
    %183 = vmatprep.subr.bf16.mxu0 0
    %184 = vmatpush1.bf16.msra.mxu0 0
    %185 = vmatprep.mubr.bf16.mxu0 0
    %186 = vmatmul.mubr.bf16.gmra.mrb[0].mxu0 %v81
    %v187 = vpop.f32.mrb[0].mxu0
    %v188 = vadd.f32 %v103, %v187
    %v189 = vpop.f32.mrb[0].mxu0
    %v190 = vpop.f32.mrb[0].mxu0
    %v191 = vpop.f32.mrb[0].mxu0
    %192 = vdwg.mxu0
    %v193 = vmax.f32 %v188, 0.0
    %v194 = vpack.c.bf16 %v193, %v193
    %v195 = vld [vmem:[#allocation7] sm:$0xf]
    %v196 = vld [vmem:[#allocation7 + $0x4] sm:$0xf]
    %v197 = vld [vmem:[#allocation7 + $0x8] sm:$0xf]
    %v198 = vld [vmem:[#allocation7 + $0xc] sm:$0xf]
    %v199 = vld [vmem:[#allocation7 + $0x10] sm:$0xf]
    %v200 = vld [vmem:[#allocation7 + $0x14] sm:$0xf]
    %v201 = vld [vmem:[#allocation7 + $0x18] sm:$0xf]
    %v202 = vld [vmem:[#allocation7 + $0x1c] sm:$0xf]
    %v203 = vld [vmem:[#allocation7 + $0x20] sm:$0xf]
    %v204 = vld [vmem:[#allocation7 + $0x24] sm:$0xf]
    %v205 = vld [vmem:[#allocation7 + $0x28] sm:$0xf]
    %v206 = vld [vmem:[#allocation7 + $0x2c] sm:$0xf]
    %v207 = vld [vmem:[#allocation7 + $0x30] sm:$0xf]
    %v208 = vld [vmem:[#allocation7 + $0x34] sm:$0xf]
    %v209 = vld [vmem:[#allocation7 + $0x38] sm:$0xf]
    %v210 = vld [vmem:[#allocation7 + $0x3c] sm:$0xf]
    %v211 = vld [vmem:[%s4] sm:$0x1]
    %v213 = vlaneseq
    %v214 = vshrl.u32 %v213, 7
    %v215 = vsub.s32 0, %v214
    %v216 = vrot.slane %v211, %v215
    %v234 = vunpack.c.l.b16 %v195
    %v235 = vunpack.c.l.b16 %v196
    %v236 = vunpack.c.l.b16 %v197
    %v237 = vunpack.c.l.b16 %v198
    %v238 = vunpack.c.l.b16 %v199
    %v239 = vunpack.c.l.b16 %v200
    %v240 = vunpack.c.l.b16 %v201
    %v241 = vunpack.c.l.b16 %v202
    %v242 = vunpack.c.l.b16 %v203
    %v243 = vunpack.c.l.b16 %v204
    %v244 = vunpack.c.l.b16 %v205
    %v245 = vunpack.c.l.b16 %v206
    %v246 = vunpack.c.l.b16 %v207
    %v247 = vunpack.c.l.b16 %v208
    %v248 = vunpack.c.l.b16 %v209
    %v249 = vunpack.c.l.b16 %v210
    %v250 = vpack.c.b16 %v235, %v234
    %v251 = vpack.c.b16 %v237, %v236
    %v252 = vpack.c.b16 %v239, %v238
    %v253 = vpack.c.b16 %v241, %v240
    %v254 = vpack.c.b16 %v243, %v242
    %v255 = vpack.c.b16 %v245, %v244
    %v256 = vpack.c.b16 %v247, %v246
    %v257 = vpack.c.b16 %v249, %v248
    %266 = vmatprep.subr.bf16.mxu0 0
    %267 = vmatpush1.bf16.msra.mxu0 %v250
    %268 = vmatprep.subr.bf16.mxu0 0
    %269 = vmatpush1.bf16.msra.mxu0 %v251
    %270 = vmatprep.subr.bf16.mxu0 0
    %271 = vmatpush1.bf16.msra.mxu0 %v252
    %272 = vmatprep.subr.bf16.mxu0 0
    %273 = vmatpush1.bf16.msra.mxu0 %v253
    %274 = vmatprep.subr.bf16.mxu0 0
    %275 = vmatpush1.bf16.msra.mxu0 %v254
    %276 = vmatprep.subr.bf16.mxu0 0
    %277 = vmatpush1.bf16.msra.mxu0 %v255
    %278 = vmatprep.subr.bf16.mxu0 0
    %279 = vmatpush1.bf16.msra.mxu0 %v256
    %280 = vmatprep.subr.bf16.mxu0 0
    %281 = vmatpush1.bf16.msra.mxu0 %v257
    %282 = vmatprep.subr.bf16.mxu0 0
    %283 = vmatpush1.bf16.msra.mxu0 0
    %284 = vmatprep.subr.bf16.mxu0 0
    %285 = vmatpush1.bf16.msra.mxu0 0
    %286 = vmatprep.subr.bf16.mxu0 0
    %287 = vmatpush1.bf16.msra.mxu0 0
    %288 = vmatprep.subr.bf16.mxu0 0
    %289 = vmatpush1.bf16.msra.mxu0 0
    %290 = vmatprep.subr.bf16.mxu0 0
    %291 = vmatpush1.bf16.msra.mxu0 0
    %292 = vmatprep.subr.bf16.mxu0 0
    %293 = vmatpush1.bf16.msra.mxu0 0
    %294 = vmatprep.subr.bf16.mxu0 0
    %295 = vmatpush1.bf16.msra.mxu0 0
    %296 = vmatprep.subr.bf16.mxu0 0
    %297 = vmatpush1.bf16.msra.mxu0 0
    %298 = vmatprep.mubr.bf16.mxu0 0
    %299 = vmatmul.mubr.bf16.gmra.mrb[0].mxu0 %v194
    %v300 = vpop.f32.mrb[0].mxu0
    %v301 = vadd.f32 %v216, %v300
    %v302 = vpop.f32.mrb[0].mxu0
    %v303 = vpop.f32.mrb[0].mxu0
    %v304 = vpop.f32.mrb[0].mxu0
    %305 = vdwg.mxu0
    %v306 = vmax.f32 %v301, 0.0
    %v307 = vpack.c.bf16 %v306, %v306
    %s308 = scalar_lea.vmem [#allocation7], 64
    %v309 = vld [vmem:[%s308] sm:$0xf]
    %v310 = vld [vmem:[%s308 + $0x4] sm:$0xf]
    %v311 = vld [vmem:[%s308 + $0x8] sm:$0xf]
    %v312 = vld [vmem:[%s308 + $0xc] sm:$0xf]
    %v313 = vld [vmem:[%s308 + $0x10] sm:$0xf]
    %v314 = vld [vmem:[%s308 + $0x14] sm:$0xf]
    %v315 = vld [vmem:[%s308 + $0x18] sm:$0xf]
    %v316 = vld [vmem:[%s308 + $0x1c] sm:$0xf]
    %v317 = vld [vmem:[%s308 + $0x20] sm:$0xf]
    %v318 = vld [vmem:[%s308 + $0x24] sm:$0xf]
    %v319 = vld [vmem:[%s308 + $0x28] sm:$0xf]
    %v320 = vld [vmem:[%s308 + $0x2c] sm:$0xf]
    %v321 = vld [vmem:[%s308 + $0x30] sm:$0xf]
    %v322 = vld [vmem:[%s308 + $0x34] sm:$0xf]
    %v323 = vld [vmem:[%s308 + $0x38] sm:$0xf]
    %v324 = vld [vmem:[%s308 + $0x3c] sm:$0xf]
    %s325 = scalar_lea.vmem %s4, 1
    %v326 = vld [vmem:[%s325] sm:$0x1]
    %v328 = vlaneseq
    %v329 = vshrl.u32 %v328, 7
    %v330 = vsub.s32 0, %v329
    %v331 = vrot.slane %v326, %v330
    %v349 = vunpack.c.l.b16 %v309
    %v350 = vunpack.c.l.b16 %v310
    %v351 = vunpack.c.l.b16 %v311
    %v352 = vunpack.c.l.b16 %v312
    %v353 = vunpack.c.l.b16 %v313
    %v354 = vunpack.c.l.b16 %v314
    %v355 = vunpack.c.l.b16 %v315
    %v356 = vunpack.c.l.b16 %v316
    %v357 = vunpack.c.l.b16 %v317
    %v358 = vunpack.c.l.b16 %v318
    %v359 = vunpack.c.l.b16 %v319
    %v360 = vunpack.c.l.b16 %v320
    %v361 = vunpack.c.l.b16 %v321
    %v362 = vunpack.c.l.b16 %v322
    %v363 = vunpack.c.l.b16 %v323
    %v364 = vunpack.c.l.b16 %v324
    %v365 = vpack.c.b16 %v350, %v349
    %v366 = vpack.c.b16 %v352, %v351
    %v367 = vpack.c.b16 %v354, %v353
    %v368 = vpack.c.b16 %v356, %v355
    %v369 = vpack.c.b16 %v358, %v357
    %v370 = vpack.c.b16 %v360, %v359
    %v371 = vpack.c.b16 %v362, %v361
    %v372 = vpack.c.b16 %v364, %v363
    %381 = vmatprep.subr.bf16.mxu0 0
    %382 = vmatpush1.bf16.msra.mxu0 %v365
    %383 = vmatprep.subr.bf16.mxu0 0
    %384 = vmatpush1.bf16.msra.mxu0 %v366
    %385 = vmatprep.subr.bf16.mxu0 0
    %386 = vmatpush1.bf16.msra.mxu0 %v367
    %387 = vmatprep.subr.bf16.mxu0 0
    %388 = vmatpush1.bf16.msra.mxu0 %v368
    %389 = vmatprep.subr.bf16.mxu0 0
    %390 = vmatpush1.bf16.msra.mxu0 %v369
    %391 = vmatprep.subr.bf16.mxu0 0
    %392 = vmatpush1.bf16.msra.mxu0 %v370
    %393 = vmatprep.subr.bf16.mxu0 0
    %394 = vmatpush1.bf16.msra.mxu0 %v371
    %395 = vmatprep.subr.bf16.mxu0 0
    %396 = vmatpush1.bf16.msra.mxu0 %v372
    %397 = vmatprep.subr.bf16.mxu0 0
    %398 = vmatpush1.bf16.msra.mxu0 0
    %399 = vmatprep.subr.bf16.mxu0 0
    %400 = vmatpush1.bf16.msra.mxu0 0
    %401 = vmatprep.subr.bf16.mxu0 0
    %402 = vmatpush1.bf16.msra.mxu0 0
    %403 = vmatprep.subr.bf16.mxu0 0
    %404 = vmatpush1.bf16.msra.mxu0 0
    %405 = vmatprep.subr.bf16.mxu0 0
    %406 = vmatpush1.bf16.msra.mxu0 0
    %407 = vmatprep.subr.bf16.mxu0 0
    %408 = vmatpush1.bf16.msra.mxu0 0
    %409 = vmatprep.subr.bf16.mxu0 0
    %410 = vmatpush1.bf16.msra.mxu0 0
    %411 = vmatprep.subr.bf16.mxu0 0
    %412 = vmatpush1.bf16.msra.mxu0 0
    %413 = vmatprep.mubr.bf16.mxu0 0
    %414 = vmatmul.mubr.bf16.gmra.mrb[0].mxu0 %v307
    %v415 = vpop.f32.mrb[0].mxu0
    %v416 = vadd.f32 %v331, %v415
    %v417 = vpop.f32.mrb[0].mxu0
    %v418 = vpop.f32.mrb[0].mxu0
    %v419 = vpop.f32.mrb[0].mxu0
    %420 = vdwg.mxu0
    %v421 = vmax.f32 %v416, 0.0
    %v422 = vpack.c.bf16 %v421, %v421
    %s423 = scalar_lea.vmem [#allocation7], 128
    %v424 = vld [vmem:[%s423] sm:$0xf]
    %v425 = vld [vmem:[%s423 + $0x4] sm:$0xf]
    %v426 = vld [vmem:[%s423 + $0x8] sm:$0xf]
    %v427 = vld [vmem:[%s423 + $0xc] sm:$0xf]
    %v428 = vld [vmem:[%s423 + $0x10] sm:$0xf]
    %v429 = vld [vmem:[%s423 + $0x14] sm:$0xf]
    %v430 = vld [vmem:[%s423 + $0x18] sm:$0xf]
    %v431 = vld [vmem:[%s423 + $0x1c] sm:$0xf]
    %v432 = vld [vmem:[%s423 + $0x20] sm:$0xf]
    %v433 = vld [vmem:[%s423 + $0x24] sm:$0xf]
    %v434 = vld [vmem:[%s423 + $0x28] sm:$0xf]
    %v435 = vld [vmem:[%s423 + $0x2c] sm:$0xf]
    %v436 = vld [vmem:[%s423 + $0x30] sm:$0xf]
    %v437 = vld [vmem:[%s423 + $0x34] sm:$0xf]
    %v438 = vld [vmem:[%s423 + $0x38] sm:$0xf]
    %v439 = vld [vmem:[%s423 + $0x3c] sm:$0xf]
    %s440 = scalar_lea.vmem %s4, 2
    %v441 = vld [vmem:[%s440] sm:$0x1]
    %v443 = vlaneseq
    %v444 = vshrl.u32 %v443, 7
    %v445 = vsub.s32 0, %v444
    %v446 = vrot.slane %v441, %v445
    %v464 = vunpack.c.l.b16 %v424
    %v465 = vunpack.c.l.b16 %v425
    %v466 = vunpack.c.l.b16 %v426
    %v467 = vunpack.c.l.b16 %v427
    %v468 = vunpack.c.l.b16 %v428
    %v469 = vunpack.c.l.b16 %v429
    %v470 = vunpack.c.l.b16 %v430
    %v471 = vunpack.c.l.b16 %v431
    %v472 = vunpack.c.l.b16 %v432
    %v473 = vunpack.c.l.b16 %v433
    %v474 = vunpack.c.l.b16 %v434
    %v475 = vunpack.c.l.b16 %v435
    %v476 = vunpack.c.l.b16 %v436
    %v477 = vunpack.c.l.b16 %v437
    %v478 = vunpack.c.l.b16 %v438
    %v479 = vunpack.c.l.b16 %v439
    %v480 = vpack.c.b16 %v465, %v464
    %v481 = vpack.c.b16 %v467, %v466
    %v482 = vpack.c.b16 %v469, %v468
    %v483 = vpack.c.b16 %v471, %v470
    %v484 = vpack.c.b16 %v473, %v472
    %v485 = vpack.c.b16 %v475, %v474
    %v486 = vpack.c.b16 %v477, %v476
    %v487 = vpack.c.b16 %v479, %v478
    %496 = vmatprep.subr.bf16.mxu0 0
    %497 = vmatpush1.bf16.msra.mxu0 %v480
    %498 = vmatprep.subr.bf16.mxu0 0
    %499 = vmatpush1.bf16.msra.mxu0 %v481
    %500 = vmatprep.subr.bf16.mxu0 0
    %501 = vmatpush1.bf16.msra.mxu0 %v482
    %502 = vmatprep.subr.bf16.mxu0 0
    %503 = vmatpush1.bf16.msra.mxu0 %v483
    %504 = vmatprep.subr.bf16.mxu0 0
    %505 = vmatpush1.bf16.msra.mxu0 %v484
    %506 = vmatprep.subr.bf16.mxu0 0
    %507 = vmatpush1.bf16.msra.mxu0 %v485
    %508 = vmatprep.subr.bf16.mxu0 0
    %509 = vmatpush1.bf16.msra.mxu0 %v486
    %510 = vmatprep.subr.bf16.mxu0 0
    %511 = vmatpush1.bf16.msra.mxu0 %v487
    %512 = vmatprep.subr.bf16.mxu0 0
    %513 = vmatpush1.bf16.msra.mxu0 0
    %514 = vmatprep.subr.bf16.mxu0 0
    %515 = vmatpush1.bf16.msra.mxu0 0
    %516 = vmatprep.subr.bf16.mxu0 0
    %517 = vmatpush1.bf16.msra.mxu0 0
    %518 = vmatprep.subr.bf16.mxu0 0
    %519 = vmatpush1.bf16.msra.mxu0 0
    %520 = vmatprep.subr.bf16.mxu0 0
    %521 = vmatpush1.bf16.msra.mxu0 0
    %522 = vmatprep.subr.bf16.mxu0 0
    %523 = vmatpush1.bf16.msra.mxu0 0
    %524 = vmatprep.subr.bf16.mxu0 0
    %525 = vmatpush1.bf16.msra.mxu0 0
    %526 = vmatprep.subr.bf16.mxu0 0
    %527 = vmatpush1.bf16.msra.mxu0 0
    %528 = vmatprep.mubr.bf16.mxu0 0
    %529 = vmatmul.mubr.bf16.gmra.mrb[0].mxu0 %v422
    %v530 = vpop.f32.mrb[0].mxu0
    %v531 = vadd.f32 %v446, %v530
    %v532 = vpop.f32.mrb[0].mxu0
    %v533 = vpop.f32.mrb[0].mxu0
    %v534 = vpop.f32.mrb[0].mxu0
    %535 = vdwg.mxu0
    %v536 = vmax.f32 %v531, 0.0
    %v537 = vpack.c.bf16 %v536, %v536
    %s538 = scalar_lea.vmem [#allocation7], 192
    %v539 = vld [vmem:[%s538] sm:$0xf]
    %v540 = vld [vmem:[%s538 + $0x4] sm:$0xf]
    %v541 = vld [vmem:[%s538 + $0x8] sm:$0xf]
    %v542 = vld [vmem:[%s538 + $0xc] sm:$0xf]
    %v543 = vld [vmem:[%s538 + $0x10] sm:$0xf]
    %v544 = vld [vmem:[%s538 + $0x14] sm:$0xf]
    %v545 = vld [vmem:[%s538 + $0x18] sm:$0xf]
    %v546 = vld [vmem:[%s538 + $0x1c] sm:$0xf]
    %v547 = vld [vmem:[%s538 + $0x20] sm:$0xf]
    %v548 = vld [vmem:[%s538 + $0x24] sm:$0xf]
    %v549 = vld [vmem:[%s538 + $0x28] sm:$0xf]
    %v550 = vld [vmem:[%s538 + $0x2c] sm:$0xf]
    %v551 = vld [vmem:[%s538 + $0x30] sm:$0xf]
    %v552 = vld [vmem:[%s538 + $0x34] sm:$0xf]
    %v553 = vld [vmem:[%s538 + $0x38] sm:$0xf]
    %v554 = vld [vmem:[%s538 + $0x3c] sm:$0xf]
    %s555 = scalar_lea.vmem %s4, 3
    %v556 = vld [vmem:[%s555] sm:$0x1]
    %v558 = vlaneseq
    %v559 = vshrl.u32 %v558, 7
    %v560 = vsub.s32 0, %v559
    %v561 = vrot.slane %v556, %v560
    %v579 = vunpack.c.l.b16 %v539
    %v580 = vunpack.c.l.b16 %v540
    %v581 = vunpack.c.l.b16 %v541
    %v582 = vunpack.c.l.b16 %v542
    %v583 = vunpack.c.l.b16 %v543
    %v584 = vunpack.c.l.b16 %v544
    %v585 = vunpack.c.l.b16 %v545
    %v586 = vunpack.c.l.b16 %v546
    %v587 = vunpack.c.l.b16 %v547
    %v588 = vunpack.c.l.b16 %v548
    %v589 = vunpack.c.l.b16 %v549
    %v590 = vunpack.c.l.b16 %v550
    %v591 = vunpack.c.l.b16 %v551
    %v592 = vunpack.c.l.b16 %v552
    %v593 = vunpack.c.l.b16 %v553
    %v594 = vunpack.c.l.b16 %v554
    %v595 = vpack.c.b16 %v580, %v579
    %v596 = vpack.c.b16 %v582, %v581
    %v597 = vpack.c.b16 %v584, %v583
    %v598 = vpack.c.b16 %v586, %v585
    %v599 = vpack.c.b16 %v588, %v587
    %v600 = vpack.c.b16 %v590, %v589
    %v601 = vpack.c.b16 %v592, %v591
    %v602 = vpack.c.b16 %v594, %v593
    %611 = vmatprep.subr.bf16.mxu0 0
    %612 = vmatpush1.bf16.msra.mxu0 %v595
    %613 = vmatprep.subr.bf16.mxu0 0
    %614 = vmatpush1.bf16.msra.mxu0 %v596
    %615 = vmatprep.subr.bf16.mxu0 0
    %616 = vmatpush1.bf16.msra.mxu0 %v597
    %617 = vmatprep.subr.bf16.mxu0 0
    %618 = vmatpush1.bf16.msra.mxu0 %v598
    %619 = vmatprep.subr.bf16.mxu0 0
    %620 = vmatpush1.bf16.msra.mxu0 %v599
    %621 = vmatprep.subr.bf16.mxu0 0
    %622 = vmatpush1.bf16.msra.mxu0 %v600
    %623 = vmatprep.subr.bf16.mxu0 0
    %624 = vmatpush1.bf16.msra.mxu0 %v601
    %625 = vmatprep.subr.bf16.mxu0 0
    %626 = vmatpush1.bf16.msra.mxu0 %v602
    %627 = vmatprep.subr.bf16.mxu0 0
    %628 = vmatpush1.bf16.msra.mxu0 0
    %629 = vmatprep.subr.bf16.mxu0 0
    %630 = vmatpush1.bf16.msra.mxu0 0
    %631 = vmatprep.subr.bf16.mxu0 0
    %632 = vmatpush1.bf16.msra.mxu0 0
    %633 = vmatprep.subr.bf16.mxu0 0
    %634 = vmatpush1.bf16.msra.mxu0 0
    %635 = vmatprep.subr.bf16.mxu0 0
    %636 = vmatpush1.bf16.msra.mxu0 0
    %637 = vmatprep.subr.bf16.mxu0 0
    %638 = vmatpush1.bf16.msra.mxu0 0
    %639 = vmatprep.subr.bf16.mxu0 0
    %640 = vmatpush1.bf16.msra.mxu0 0
    %641 = vmatprep.subr.bf16.mxu0 0
    %642 = vmatpush1.bf16.msra.mxu0 0
    %643 = vmatprep.mubr.bf16.mxu0 0
    %644 = vmatmul.mubr.bf16.gmra.mrb[0].mxu0 %v537
    %v645 = vpop.f32.mrb[0].mxu0
    %v646 = vadd.f32 %v561, %v645
    %v647 = vpop.f32.mrb[0].mxu0
    %v648 = vpop.f32.mrb[0].mxu0
    %v649 = vpop.f32.mrb[0].mxu0
    %650 = vdwg.mxu0
    %v651 = vmax.f32 %v646, 0.0
    %v652 = vpack.c.bf16 %v651, %v651
    %s653 = scalar_lea.vmem [#allocation7], 256
    %v654 = vld [vmem:[%s653] sm:$0xf]
    %v655 = vld [vmem:[%s653 + $0x4] sm:$0xf]
    %v656 = vld [vmem:[%s653 + $0x8] sm:$0xf]
    %v657 = vld [vmem:[%s653 + $0xc] sm:$0xf]
    %v658 = vld [vmem:[%s653 + $0x10] sm:$0xf]
    %v659 = vld [vmem:[%s653 + $0x14] sm:$0xf]
    %v660 = vld [vmem:[%s653 + $0x18] sm:$0xf]
    %v661 = vld [vmem:[%s653 + $0x1c] sm:$0xf]
    %v662 = vld [vmem:[%s653 + $0x20] sm:$0xf]
    %v663 = vld [vmem:[%s653 + $0x24] sm:$0xf]
    %v664 = vld [vmem:[%s653 + $0x28] sm:$0xf]
    %v665 = vld [vmem:[%s653 + $0x2c] sm:$0xf]
    %v666 = vld [vmem:[%s653 + $0x30] sm:$0xf]
    %v667 = vld [vmem:[%s653 + $0x34] sm:$0xf]
    %v668 = vld [vmem:[%s653 + $0x38] sm:$0xf]
    %v669 = vld [vmem:[%s653 + $0x3c] sm:$0xf]
    %s670 = scalar_lea.vmem %s4, 4
    %v671 = vld [vmem:[%s670] sm:$0x1]
    %v673 = vlaneseq
    %v674 = vshrl.u32 %v673, 7
    %v675 = vsub.s32 0, %v674
    %v676 = vrot.slane %v671, %v675
    %v694 = vunpack.c.l.b16 %v654
    %v695 = vunpack.c.l.b16 %v655
    %v696 = vunpack.c.l.b16 %v656
    %v697 = vunpack.c.l.b16 %v657
    %v698 = vunpack.c.l.b16 %v658
    %v699 = vunpack.c.l.b16 %v659
    %v700 = vunpack.c.l.b16 %v660
    %v701 = vunpack.c.l.b16 %v661
    %v702 = vunpack.c.l.b16 %v662
    %v703 = vunpack.c.l.b16 %v663
    %v704 = vunpack.c.l.b16 %v664
    %v705 = vunpack.c.l.b16 %v665
    %v706 = vunpack.c.l.b16 %v666
    %v707 = vunpack.c.l.b16 %v667
    %v708 = vunpack.c.l.b16 %v668
    %v709 = vunpack.c.l.b16 %v669
    %v710 = vpack.c.b16 %v695, %v694
    %v711 = vpack.c.b16 %v697, %v696
    %v712 = vpack.c.b16 %v699, %v698
    %v713 = vpack.c.b16 %v701, %v700
    %v714 = vpack.c.b16 %v703, %v702
    %v715 = vpack.c.b16 %v705, %v704
    %v716 = vpack.c.b16 %v707, %v706
    %v717 = vpack.c.b16 %v709, %v708
    %726 = vmatprep.subr.bf16.mxu0 0
    %727 = vmatpush1.bf16.msra.mxu0 %v710
    %728 = vmatprep.subr.bf16.mxu0 0
    %729 = vmatpush1.bf16.msra.mxu0 %v711
    %730 = vmatprep.subr.bf16.mxu0 0
    %731 = vmatpush1.bf16.msra.mxu0 %v712
    %732 = vmatprep.subr.bf16.mxu0 0
    %733 = vmatpush1.bf16.msra.mxu0 %v713
    %734 = vmatprep.subr.bf16.mxu0 0
    %735 = vmatpush1.bf16.msra.mxu0 %v714
    %736 = vmatprep.subr.bf16.mxu0 0
    %737 = vmatpush1.bf16.msra.mxu0 %v715
    %738 = vmatprep.subr.bf16.mxu0 0
    %739 = vmatpush1.bf16.msra.mxu0 %v716
    %740 = vmatprep.subr.bf16.mxu0 0
    %741 = vmatpush1.bf16.msra.mxu0 %v717
    %742 = vmatprep.subr.bf16.mxu0 0
    %743 = vmatpush1.bf16.msra.mxu0 0
    %744 = vmatprep.subr.bf16.mxu0 0
    %745 = vmatpush1.bf16.msra.mxu0 0
    %746 = vmatprep.subr.bf16.mxu0 0
    %747 = vmatpush1.bf16.msra.mxu0 0
    %748 = vmatprep.subr.bf16.mxu0 0
    %749 = vmatpush1.bf16.msra.mxu0 0
    %750 = vmatprep.subr.bf16.mxu0 0
    %751 = vmatpush1.bf16.msra.mxu0 0
    %752 = vmatprep.subr.bf16.mxu0 0
    %753 = vmatpush1.bf16.msra.mxu0 0
    %754 = vmatprep.subr.bf16.mxu0 0
    %755 = vmatpush1.bf16.msra.mxu0 0
    %756 = vmatprep.subr.bf16.mxu0 0
    %757 = vmatpush1.bf16.msra.mxu0 0
    %758 = vmatprep.mubr.bf16.mxu0 0
    %759 = vmatmul.mubr.bf16.gmra.mrb[0].mxu0 %v652
    %v760 = vpop.f32.mrb[0].mxu0
    %v761 = vadd.f32 %v676, %v760
    %v762 = vpop.f32.mrb[0].mxu0
    %v763 = vpop.f32.mrb[0].mxu0
    %v764 = vpop.f32.mrb[0].mxu0
    %765 = vdwg.mxu0
    %v766 = vmax.f32 %v761, 0.0
    %v767 = vpack.c.bf16 %v766, %v766
    %s768 = scalar_lea.vmem [#allocation7], 320
    %v769 = vld [vmem:[%s768] sm:$0xf]
    %v770 = vld [vmem:[%s768 + $0x4] sm:$0xf]
    %v771 = vld [vmem:[%s768 + $0x8] sm:$0xf]
    %v772 = vld [vmem:[%s768 + $0xc] sm:$0xf]
    %v773 = vld [vmem:[%s768 + $0x10] sm:$0xf]
    %v774 = vld [vmem:[%s768 + $0x14] sm:$0xf]
    %v775 = vld [vmem:[%s768 + $0x18] sm:$0xf]
    %v776 = vld [vmem:[%s768 + $0x1c] sm:$0xf]
    %v777 = vld [vmem:[%s768 + $0x20] sm:$0xf]
    %v778 = vld [vmem:[%s768 + $0x24] sm:$0xf]
    %v779 = vld [vmem:[%s768 + $0x28] sm:$0xf]
    %v780 = vld [vmem:[%s768 + $0x2c] sm:$0xf]
    %v781 = vld [vmem:[%s768 + $0x30] sm:$0xf]
    %v782 = vld [vmem:[%s768 + $0x34] sm:$0xf]
    %v783 = vld [vmem:[%s768 + $0x38] sm:$0xf]
    %v784 = vld [vmem:[%s768 + $0x3c] sm:$0xf]
    %s785 = scalar_lea.vmem %s4, 5
    %v786 = vld [vmem:[%s785] sm:$0x1]
    %v788 = vlaneseq
    %v789 = vshrl.u32 %v788, 7
    %v790 = vsub.s32 0, %v789
    %v791 = vrot.slane %v786, %v790
    %v809 = vunpack.c.l.b16 %v769
    %v810 = vunpack.c.l.b16 %v770
    %v811 = vunpack.c.l.b16 %v771
    %v812 = vunpack.c.l.b16 %v772
    %v813 = vunpack.c.l.b16 %v773
    %v814 = vunpack.c.l.b16 %v774
    %v815 = vunpack.c.l.b16 %v775
    %v816 = vunpack.c.l.b16 %v776
    %v817 = vunpack.c.l.b16 %v777
    %v818 = vunpack.c.l.b16 %v778
    %v819 = vunpack.c.l.b16 %v779
    %v820 = vunpack.c.l.b16 %v780
    %v821 = vunpack.c.l.b16 %v781
    %v822 = vunpack.c.l.b16 %v782
    %v823 = vunpack.c.l.b16 %v783
    %v824 = vunpack.c.l.b16 %v784
    %v825 = vpack.c.b16 %v810, %v809
    %v826 = vpack.c.b16 %v812, %v811
    %v827 = vpack.c.b16 %v814, %v813
    %v828 = vpack.c.b16 %v816, %v815
    %v829 = vpack.c.b16 %v818, %v817
    %v830 = vpack.c.b16 %v820, %v819
    %v831 = vpack.c.b16 %v822, %v821
    %v832 = vpack.c.b16 %v824, %v823
    %841 = vmatprep.subr.bf16.mxu0 0
    %842 = vmatpush1.bf16.msra.mxu0 %v825
    %843 = vmatprep.subr.bf16.mxu0 0
    %844 = vmatpush1.bf16.msra.mxu0 %v826
    %845 = vmatprep.subr.bf16.mxu0 0
    %846 = vmatpush1.bf16.msra.mxu0 %v827
    %847 = vmatprep.subr.bf16.mxu0 0
    %848 = vmatpush1.bf16.msra.mxu0 %v828
    %849 = vmatprep.subr.bf16.mxu0 0
    %850 = vmatpush1.bf16.msra.mxu0 %v829
    %851 = vmatprep.subr.bf16.mxu0 0
    %852 = vmatpush1.bf16.msra.mxu0 %v830
    %853 = vmatprep.subr.bf16.mxu0 0
    %854 = vmatpush1.bf16.msra.mxu0 %v831
    %855 = vmatprep.subr.bf16.mxu0 0
    %856 = vmatpush1.bf16.msra.mxu0 %v832
    %857 = vmatprep.subr.bf16.mxu0 0
    %858 = vmatpush1.bf16.msra.mxu0 0
    %859 = vmatprep.subr.bf16.mxu0 0
    %860 = vmatpush1.bf16.msra.mxu0 0
    %861 = vmatprep.subr.bf16.mxu0 0
    %862 = vmatpush1.bf16.msra.mxu0 0
    %863 = vmatprep.subr.bf16.mxu0 0
    %864 = vmatpush1.bf16.msra.mxu0 0
    %865 = vmatprep.subr.bf16.mxu0 0
    %866 = vmatpush1.bf16.msra.mxu0 0
    %867 = vmatprep.subr.bf16.mxu0 0
    %868 = vmatpush1.bf16.msra.mxu0 0
    %869 = vmatprep.subr.bf16.mxu0 0
    %870 = vmatpush1.bf16.msra.mxu0 0
    %871 = vmatprep.subr.bf16.mxu0 0
    %872 = vmatpush1.bf16.msra.mxu0 0
    %873 = vmatprep.mubr.bf16.mxu0 0
    %874 = vmatmul.mubr.bf16.gmra.mrb[0].mxu0 %v767
    %v875 = vpop.f32.mrb[0].mxu0
    %v876 = vadd.f32 %v791, %v875
    %v877 = vpop.f32.mrb[0].mxu0
    %v878 = vpop.f32.mrb[0].mxu0
    %v879 = vpop.f32.mrb[0].mxu0
    %880 = vdwg.mxu0
    %v881 = vmax.f32 %v876, 0.0
    %v882 = vpack.c.bf16 %v881, %v881
    %v883 = vld [vmem:[#allocation8] sm:$0xf]
    %v884 = vld [vmem:[#allocation8 + $0x4] sm:$0xf]
    %v885 = vld [vmem:[#allocation8 + $0x8] sm:$0xf]
    %v886 = vld [vmem:[#allocation8 + $0xc] sm:$0xf]
    %v887 = vld [vmem:[#allocation8 + $0x10] sm:$0xf]
    %v888 = vld [vmem:[#allocation8 + $0x14] sm:$0xf]
    %v889 = vld [vmem:[#allocation8 + $0x18] sm:$0xf]
    %v890 = vld [vmem:[#allocation8 + $0x1c] sm:$0xf]
    %v891 = vld [vmem:[#allocation8 + $0x20] sm:$0xf]
    %v892 = vld [vmem:[#allocation8 + $0x24] sm:$0xf]
    %v893 = vld [vmem:[#allocation8 + $0x28] sm:$0xf]
    %v894 = vld [vmem:[#allocation8 + $0x2c] sm:$0xf]
    %v895 = vld [vmem:[#allocation8 + $0x30] sm:$0xf]
    %v896 = vld [vmem:[#allocation8 + $0x34] sm:$0xf]
    %v897 = vld [vmem:[#allocation8 + $0x38] sm:$0xf]
    %v898 = vld [vmem:[#allocation8 + $0x3c] sm:$0xf]
    %v899 = vld [vmem:[%s6] sm:$0x1]
    %v901 = vlaneseq
    %v902 = vshrl.u32 %v901, 7
    %v903 = vsub.s32 0, %v902
    %v904 = vrot.slane %v899, %v903
    %v922 = vunpack.c.l.b16 %v883
    %v923 = vunpack.c.l.b16 %v884
    %v924 = vunpack.c.l.b16 %v885
    %v925 = vunpack.c.l.b16 %v886
    %v926 = vunpack.c.l.b16 %v887
    %v927 = vunpack.c.l.b16 %v888
    %v928 = vunpack.c.l.b16 %v889
    %v929 = vunpack.c.l.b16 %v890
    %v930 = vunpack.c.l.b16 %v891
    %v931 = vunpack.c.l.b16 %v892
    %v932 = vunpack.c.l.b16 %v893
    %v933 = vunpack.c.l.b16 %v894
    %v934 = vunpack.c.l.b16 %v895
    %v935 = vunpack.c.l.b16 %v896
    %v936 = vunpack.c.l.b16 %v897
    %v937 = vunpack.c.l.b16 %v898
    %v938 = vpack.c.b16 %v923, %v922
    %v939 = vpack.c.b16 %v925, %v924
    %v940 = vpack.c.b16 %v927, %v926
    %v941 = vpack.c.b16 %v929, %v928
    %v942 = vpack.c.b16 %v931, %v930
    %v943 = vpack.c.b16 %v933, %v932
    %v944 = vpack.c.b16 %v935, %v934
    %v945 = vpack.c.b16 %v937, %v936
    %954 = vmatprep.subr.bf16.mxu0 0
    %955 = vmatpush1.bf16.msra.mxu0 %v938
    %956 = vmatprep.subr.bf16.mxu0 0
    %957 = vmatpush1.bf16.msra.mxu0 %v939
    %958 = vmatprep.subr.bf16.mxu0 0
    %959 = vmatpush1.bf16.msra.mxu0 %v940
    %960 = vmatprep.subr.bf16.mxu0 0
    %961 = vmatpush1.bf16.msra.mxu0 %v941
    %962 = vmatprep.subr.bf16.mxu0 0
    %963 = vmatpush1.bf16.msra.mxu0 %v942
    %964 = vmatprep.subr.bf16.mxu0 0
    %965 = vmatpush1.bf16.msra.mxu0 %v943
    %966 = vmatprep.subr.bf16.mxu0 0
    %967 = vmatpush1.bf16.msra.mxu0 %v944
    %968 = vmatprep.subr.bf16.mxu0 0
    %969 = vmatpush1.bf16.msra.mxu0 %v945
    %970 = vmatprep.subr.bf16.mxu0 0
    %971 = vmatpush1.bf16.msra.mxu0 0
    %972 = vmatprep.subr.bf16.mxu0 0
    %973 = vmatpush1.bf16.msra.mxu0 0
    %974 = vmatprep.subr.bf16.mxu0 0
    %975 = vmatpush1.bf16.msra.mxu0 0
    %976 = vmatprep.subr.bf16.mxu0 0
    %977 = vmatpush1.bf16.msra.mxu0 0
    %978 = vmatprep.subr.bf16.mxu0 0
    %979 = vmatpush1.bf16.msra.mxu0 0
    %980 = vmatprep.subr.bf16.mxu0 0
    %981 = vmatpush1.bf16.msra.mxu0 0
    %982 = vmatprep.subr.bf16.mxu0 0
    %983 = vmatpush1.bf16.msra.mxu0 0
    %984 = vmatprep.subr.bf16.mxu0 0
    %985 = vmatpush1.bf16.msra.mxu0 0
    %986 = vmatprep.mubr.bf16.mxu0 0
    %987 = vmatmul.mubr.bf16.gmra.mrb[0].mxu0 %v882
    %v988 = vpop.f32.mrb[0].mxu0
    %v989 = vadd.f32 %v904, %v988
    %v990 = vpop.f32.mrb[0].mxu0
    %v991 = vpop.f32.mrb[0].mxu0
    %v992 = vpop.f32.mrb[0].mxu0
    %993 = vdwg.mxu0
    %994 = vst [vmem:[#allocation10] sm:$0xff] %v989
    // Predicated region
    $region46: #{tpu_custom_call.1} parent=1 // pred_check
      _
    $region47: #{tpu_custom_call.1} parent=1 // pred_check_branch
      %996 = sbr.rel (0) target = $region49
    $region48: #{tpu_custom_call.1} parent=1 // pred_region
      %s998 = ssub.s32 128, 128
      %999 = vsyncadd [#allocation4], %s998
      %s1001 = sshll.u32 [#allocation10], 4
      %s1002 = int_to_ptr.vmem [resolvable:$true] %s1001
      %1004 = dma.vmem_to_hbm [thread:$0]  %s1002, 128, %s7, [#allocation4]
    $region49: #{tpu_custom_call.1} parent=1 // pred_fallthru
      _
    // Predicated region
    $region50: #{tpu_custom_call.1} parent=1 // pred_check
      _
    $region51: #{tpu_custom_call.1} parent=1 // pred_check_branch
      %1006 = sbr.rel (0) target = $region53
    $region52: #{tpu_custom_call.1} parent=1 // pred_region
      %1007 = dma.done [#allocation4], 128
    $region53: #{tpu_custom_call.1} parent=1 // pred_fallthru
      _
    %1008 = vsyncpa [#allocation3], 1
    %1009 = vsyncpa [#allocation6], 1
    %1010 = vsyncpa [#allocation9], 1
    %1011 = vsyncpa [#allocation4], 1

</llo_original>
